<compile_context>
chip_gen: v7x
topology: tpu7x:2x2x1
jax: 0.10.0
libtpu: 0.0.40
codegen_flags: <defaults>
</compile_context>

<pallas_src>
import numpy as np
import jax
import jax.numpy as jnp
from jax.experimental import pallas as pl
from jax.experimental.pallas import tpu as pltpu

NUM_SYMBOLS = 5
NUM_SUBCARRIERS = 33
TXY, TXX = 8, 8
P = TXY * TXX                              # 64 spatial positions per sample
KDIM = NUM_SYMBOLS * NUM_SUBCARRIERS       # 165 combined (symbol, subcarrier)


def _cdiv(a, b):
    return (a + b - 1) // b


def _round_up(a, b):
    return _cdiv(a, b) * b


def build_combined_operator(w_delay, w_dopp):
    """One-time construction of the fused complex operator (hoisted out of
    the per-call wrapper).

      W_c[t*33 + w, v*33 + d] = W_dopp[t, v] * W_delay[w, d]

    Returns (Wr, Wi, Wr + Wi) as float32 arrays for the Gauss 3-multiply.
    """
    wc = np.kron(np.asarray(w_dopp, dtype=np.complex64),
                 np.asarray(w_delay, dtype=np.complex64))     # [165, 165]
    wr = jnp.asarray(wc.real, dtype=jnp.float32)
    wi = jnp.asarray(wc.imag, dtype=jnp.float32)
    return wr, wi, wr + wi


def _dd_kernel(xr_ref, xi_ref, wr_ref, wi_ref, ws_ref, yr_ref, yi_ref):
    xr = xr_ref[...]                       # [BM, 165]
    xi = xi_ref[...]
    # Gauss 3-multiply complex matmul: real = P1-P2, imag = P3-P1-P2.
    p1 = jnp.dot(xr, wr_ref[...], preferred_element_type=jnp.float32)
    p2 = jnp.dot(xi, wi_ref[...], preferred_element_type=jnp.float32)
    p3 = jnp.dot(xr + xi, ws_ref[...], preferred_element_type=jnp.float32)
    yr_ref[...] = p1 - p2
    yi_ref[...] = p3 - p1 - p2


def _pick_block_rows(m, max_block=512):
    """Rows (= batch*64) per grid step.

    Sublane-aligned (multiple of 8), as large as possible up to max_block
    (512 rows = 8 batch elements -> M-dim multiple of 256 for the v6e/v7x MXU
    and of 128 for v5e), while keeping at least 2 grid steps so both v7x
    TensorCores get work.
    """
    bm = min(max_block, _round_up(m, 8))
    if m > 8 and _cdiv(m, bm) < 2:
        bm = _round_up(_cdiv(m, 2), 8)
    return bm


def delay_doppler_transform(x_complex, wr, wi, ws, block_rows=None):
    """x_complex: complex64 [N, 5, 8, 8, 33] -> complex64 [N, 5, 8, 8, 33].

    wr/wi/ws: outputs of build_combined_operator (each [165, 165] float32).
    """
    N = x_complex.shape[0]
    M = N * P

    # Layout plumbing: [N,5,8,8,33] -> [N,64,5,33] -> rows [N*64, 165]
    # (row = (n, spatial), col = t*33 + w), so the kernel sees one big
    # lane-dense 2-D matmul operand.
    def to_rows(a):
        a = a.reshape(N, NUM_SYMBOLS, P, NUM_SUBCARRIERS)
        a = jnp.transpose(a, (0, 2, 1, 3))
        return a.reshape(M, KDIM)

    xr = to_rows(jnp.real(x_complex).astype(jnp.float32))
    xi = to_rows(jnp.imag(x_complex).astype(jnp.float32))

    bm = block_rows if block_rows is not None else _pick_block_rows(M)
    m_pad = _round_up(M, bm)
    if m_pad != M:
        xr = jnp.pad(xr, ((0, m_pad - M), (0, 0)))
        xi = jnp.pad(xi, ((0, m_pad - M), (0, 0)))

    grid = (m_pad // bm,)
    row_spec = pl.BlockSpec((bm, KDIM), lambda i: (i, 0))
    w_spec = pl.BlockSpec((KDIM, KDIM), lambda i: (0, 0))

    yr, yi = pl.pallas_call(
        _dd_kernel,
        out_shape=(
            jax.ShapeDtypeStruct((m_pad, KDIM), jnp.float32),
            jax.ShapeDtypeStruct((m_pad, KDIM), jnp.float32),
        ),
        grid_spec=pltpu.PrefetchScalarGridSpec(
            num_scalar_prefetch=0,
            grid=grid,
            in_specs=[row_spec, row_spec, w_spec, w_spec, w_spec],
            out_specs=[row_spec, row_spec],
        ),
        compiler_params=pltpu.CompilerParams(
            dimension_semantics=("parallel",)),
    )(xr, xi, wr, wi, ws)

    y = (yr[:M] + 1j * yi[:M]).astype(jnp.complex64)
    y = y.reshape(N, P, NUM_SYMBOLS, NUM_SUBCARRIERS)
    y = jnp.transpose(y, (0, 2, 1, 3))
    return y.reshape(N, NUM_SYMBOLS, TXY, TXX, NUM_SUBCARRIERS)


def _reference(x_complex, w_delay, w_dopp):
    """Pure-JAX replica of the PyTorch forward for verification."""
    N = x_complex.shape[0]
    x = x_complex.reshape(N, NUM_SYMBOLS, TXY, TXX, NUM_SUBCARRIERS)
    x = jnp.matmul(x, w_delay)                       # over subcarriers
    x = jnp.transpose(x, (0, 2, 3, 4, 1))            # [N, 8, 8, 33, T]
    x = jnp.matmul(x, w_dopp)                        # over symbols
    x = jnp.transpose(x, (0, 4, 1, 2, 3))            # [N, T, 8, 8, 33]
    return x


if __name__ == "__main__":
    # Deterministic parameter init (same construction as the PyTorch __init__)
    F_delay = np.fft.ifft(np.eye(NUM_SUBCARRIERS)) * np.sqrt(NUM_SUBCARRIERS)
    F_dopp = np.fft.fft(np.eye(NUM_SYMBOLS)) / np.sqrt(NUM_SYMBOLS)
    w_delay = jnp.asarray(F_delay.astype(np.complex64))
    w_dopp = jnp.asarray(F_dopp.astype(np.complex64))

    # Fused operator built once, outside the forward.
    wr, wi, ws = build_combined_operator(F_delay.astype(np.complex64),
                                         F_dopp.astype(np.complex64))

    # Deterministic small input: [N, T, TX_Y, TX_X, W] = [2, 5, 8, 8, 33]
    key = jax.random.PRNGKey(0)
    kr, ki = jax.random.split(key)
    shape = (2, NUM_SYMBOLS, TXY, TXX, NUM_SUBCARRIERS)
    x_complex = (jax.random.normal(kr, shape, dtype=jnp.float32)
                 + 1j * jax.random.normal(ki, shape, dtype=jnp.float32)
                 ).astype(jnp.complex64)

    out = delay_doppler_transform(x_complex, wr, wi, ws)
    out = jax.block_until_ready(out)

    ref = _reference(x_complex, w_delay, w_dopp)
    assert out.shape == ref.shape == shape
    np.testing.assert_allclose(np.asarray(out), np.asarray(ref),
                               rtol=2e-3, atol=2e-3)
    print("KERNEL_OK")
</pallas_src>

<mosaic_0001>
module attributes {stable_mosaic.version = 11 : i64} {
  func.func @_dd_kernel(%arg0: i32, %arg1: memref<64x165xf32, #tpu.memory_space<vmem>>, %arg2: memref<64x165xf32, #tpu.memory_space<vmem>>, %arg3: memref<165x165xf32, #tpu.memory_space<vmem>>, %arg4: memref<165x165xf32, #tpu.memory_space<vmem>>, %arg5: memref<165x165xf32, #tpu.memory_space<vmem>>, %arg6: memref<64x165xf32, #tpu.memory_space<vmem>>, %arg7: memref<64x165xf32, #tpu.memory_space<vmem>>) attributes {dimension_semantics = [#tpu.dimension_semantics<parallel>], iteration_bounds = array<i64: 2>, scalar_prefetch = 0 : i64, scratch_operands = 0 : i64, tpu.core_type = #tpu.core_type<tc>, window_params = [{transform_indices = @transform_0, window_bounds = array<i64: 64, 165>}, {transform_indices = @transform_1, window_bounds = array<i64: 64, 165>}, {pipeline_mode = #tpu.pipeline_mode<synchronous>, transform_indices = @transform_2, window_bounds = array<i64: 165, 165>}, {pipeline_mode = #tpu.pipeline_mode<synchronous>, transform_indices = @transform_3, window_bounds = array<i64: 165, 165>}, {pipeline_mode = #tpu.pipeline_mode<synchronous>, transform_indices = @transform_4, window_bounds = array<i64: 165, 165>}, {transform_indices = @transform_5, window_bounds = array<i64: 64, 165>}, {transform_indices = @transform_6, window_bounds = array<i64: 64, 165>}]} {
    %c0 = arith.constant 0 : index
    %c0_0 = arith.constant 0 : index
    %0 = vector.load %arg1[%c0, %c0_0] : memref<64x165xf32, #tpu.memory_space<vmem>>, vector<64x165xf32>
    %c0_1 = arith.constant 0 : index
    %c0_2 = arith.constant 0 : index
    %1 = vector.load %arg2[%c0_1, %c0_2] : memref<64x165xf32, #tpu.memory_space<vmem>>, vector<64x165xf32>
    %c0_3 = arith.constant 0 : index
    %c0_4 = arith.constant 0 : index
    %2 = vector.load %arg3[%c0_3, %c0_4] : memref<165x165xf32, #tpu.memory_space<vmem>>, vector<165x165xf32>
    %cst = arith.constant dense<0.000000e+00> : vector<64x165xf32>
    %3 = tpu.matmul %0, %2, %cst {dimension_numbers = #tpu.dot_dimension_numbers<[1], [0], [0], [1], [0, 0, 1, 1], [], []>} : vector<64x165xf32>, vector<165x165xf32>, vector<64x165xf32> -> vector<64x165xf32>
    %c0_5 = arith.constant 0 : index
    %c0_6 = arith.constant 0 : index
    %4 = vector.load %arg4[%c0_5, %c0_6] : memref<165x165xf32, #tpu.memory_space<vmem>>, vector<165x165xf32>
    %cst_7 = arith.constant dense<0.000000e+00> : vector<64x165xf32>
    %5 = tpu.matmul %1, %4, %cst_7 {dimension_numbers = #tpu.dot_dimension_numbers<[1], [0], [0], [1], [0, 0, 1, 1], [], []>} : vector<64x165xf32>, vector<165x165xf32>, vector<64x165xf32> -> vector<64x165xf32>
    %6 = arith.addf %0, %1 : vector<64x165xf32>
    %c0_8 = arith.constant 0 : index
    %c0_9 = arith.constant 0 : index
    %7 = vector.load %arg5[%c0_8, %c0_9] : memref<165x165xf32, #tpu.memory_space<vmem>>, vector<165x165xf32>
    %cst_10 = arith.constant dense<0.000000e+00> : vector<64x165xf32>
    %8 = tpu.matmul %6, %7, %cst_10 {dimension_numbers = #tpu.dot_dimension_numbers<[1], [0], [0], [1], [0, 0, 1, 1], [], []>} : vector<64x165xf32>, vector<165x165xf32>, vector<64x165xf32> -> vector<64x165xf32>
    %9 = arith.subf %3, %5 : vector<64x165xf32>
    %c0_11 = arith.constant 0 : index
    %c0_12 = arith.constant 0 : index
    %10 = vector.load %arg6[%c0_11, %c0_12] : memref<64x165xf32, #tpu.memory_space<vmem>>, vector<64x165xf32>
    tpu.vector_store %arg6[%c0_11, %c0_12], %9 {strides = array<i32>} : memref<64x165xf32, #tpu.memory_space<vmem>>, vector<64x165xf32>,
    %11 = arith.subf %8, %3 : vector<64x165xf32>
    %12 = arith.subf %11, %5 : vector<64x165xf32>
    %c0_13 = arith.constant 0 : index
    %c0_14 = arith.constant 0 : index
    %13 = vector.load %arg7[%c0_13, %c0_14] : memref<64x165xf32, #tpu.memory_space<vmem>>, vector<64x165xf32>
    tpu.vector_store %arg7[%c0_13, %c0_14], %12 {strides = array<i32>} : memref<64x165xf32, #tpu.memory_space<vmem>>, vector<64x165xf32>,
    return
  }
  func.func @transform_0(%arg0: i32) -> (i32, i32) {
    %c0_i32 = arith.constant 0 : i32
    %c0_i32_0 = arith.constant 0 : i32
    return %arg0, %c0_i32 : i32, i32
  }
  func.func @transform_1(%arg0: i32) -> (i32, i32) {
    %c0_i32 = arith.constant 0 : i32
    %c0_i32_0 = arith.constant 0 : i32
    return %arg0, %c0_i32 : i32, i32
  }
  func.func @transform_2(%arg0: i32) -> (i32, i32) {
    %c0_i32 = arith.constant 0 : i32
    %c0_i32_0 = arith.constant 0 : i32
    %c0_i32_1 = arith.constant 0 : i32
    return %c0_i32, %c0_i32_0 : i32, i32
  }
  func.func @transform_3(%arg0: i32) -> (i32, i32) {
    %c0_i32 = arith.constant 0 : i32
    %c0_i32_0 = arith.constant 0 : i32
    %c0_i32_1 = arith.constant 0 : i32
    return %c0_i32, %c0_i32_0 : i32, i32
  }
  func.func @transform_4(%arg0: i32) -> (i32, i32) {
    %c0_i32 = arith.constant 0 : i32
    %c0_i32_0 = arith.constant 0 : i32
    %c0_i32_1 = arith.constant 0 : i32
    return %c0_i32, %c0_i32_0 : i32, i32
  }
  func.func @transform_5(%arg0: i32) -> (i32, i32) {
    %c0_i32 = arith.constant 0 : i32
    %c0_i32_0 = arith.constant 0 : i32
    return %arg0, %c0_i32 : i32, i32
  }
  func.func @transform_6(%arg0: i32) -> (i32, i32) {
    %c0_i32 = arith.constant 0 : i32
    %c0_i32_0 = arith.constant 0 : i32
    return %arg0, %c0_i32 : i32, i32
  }
}

</mosaic_0001>

<llo_original>
// kernel: tpu_custom_call.1
$region0: #{tpu_custom_call.1}
  #allocation0 [shape = 'u32[]', space=smem, size = 0x4, offset = 0x4, fixed_abs, tag = 'smem constant byte address 0x4 - core index']
  #allocation1 [shape = 'u32[144,128]{1,0:T(1,128)}', space=vmem, size = 0x12000, scoped, tag = 'internal scratch']
  %s0 = inlined_call_operand.vmem [shape: f32[128,165], index: 0, kind: input, shape index: {}]
  %s1 = inlined_call_operand.vmem [shape: f32[128,165], index: 1, kind: input, shape index: {}]
  %s2 = inlined_call_operand.vmem [shape: f32[165,165], index: 2, kind: input, shape index: {}]
  %s3 = inlined_call_operand.vmem [shape: f32[165,165], index: 3, kind: input, shape index: {}]
  %s4 = inlined_call_operand.hbm [shape: f32[165,165], index: 4, kind: input, shape index: {}]
  %s5 = inlined_call_operand.vmem [shape: f32[128,165], index: 5, kind: output, shape index: {0}]
  %s6 = inlined_call_operand.vmem [shape: f32[128,165], index: 6, kind: output, shape index: {1}]
  %7 = xla_tuple %s5, %s6
  %s8 = sld [smem:[#allocation0]]
  $region65: #{tpu_custom_call.1} parent=0
    _
  %s10 = ssub.s32 1, %s8
  %s11 = scalar_select 0, %s10, %s8
  $region1: #{tpu_custom_call.1} parent=0
    #allocation2 [shape = 'u8[172032]{0}', space=vmem, size = 0x2a000, scoped, tag = 'input window, operand 4, single buffered']
    #allocation3 [shape = 's32[2]{0}', space=sflag, size = 0x8, scoped, tag = 'scoped memory for tpu_custom_call.1']
    %12 = vsyncpa [#allocation3], 0
    loop: start=0, step=1, limit=4
    $region2: #{tpu_custom_call.1} parent=1 // loop_pre_header
      _
    $region3: #{tpu_custom_call.1} parent=1 // loop_header
      %s14 = sphi 0, %s18
      %p15 = scmp.ge.s32.totalorder %s14, 4
      %s24 = sphi 0, %s26
      %s27 = sphi 0, %s24
      %s28 = sphi 0, %s27
      %s44 = sphi 0, %s28
      %s50 = sphi 0, %s52
      %s53 = sphi 0, %s50
      %s54 = sphi 0, %s53
      %s70 = sphi 0, %s54
      %s74 = sphi 0, %s74
      %s76 = sphi 0, %s74
      %s77 = sphi 0, %s76
      %s91 = sphi 0, %s77
      %s95 = sphi 0, %s95
      %s97 = sphi 0, %s95
      %s98 = sphi 0, %s97
      %s112 = sphi 0, %s98
      %s116 = sphi 0, %s116
      %s118 = sphi 0, %s116
      %s119 = sphi 0, %s118
      %s133 = sphi 0, %s119
      %s139 = sphi 0, %s141
      %s142 = sphi 0, %s139
      %s143 = sphi 0, %s142
      %s159 = sphi 0, %s143
      %s165 = sphi 0, %s167
      %s168 = sphi 0, %s165
      %s169 = sphi 0, %s168
      %s185 = sphi 0, %s169
    $region4: #{tpu_custom_call.1} parent=1 // loop_header_branch
      %17 = sbr.rel (%p15) target = $region8
    $region5: #{tpu_custom_call.1} parent=1 // loop_body
      %s19 = ssub.s32 %s14, 1
      %s20 = ssub.s32 %s14, 2
      %s21 = sadd.s32 %s14, 1
      %s22 = ssub.s32 %s14, %s21
      %p23 = scmp.eq.s32.totalorder %s22, 0
      %s25 = sadd.s32 %s24, 1
      %s26 = scalar_select %p23, %s24, %s25
      %p29 = pneg %p23
      %p30 = scmp.eq.s32.totalorder %s14, 1
      %p31 = por %p29, %p30
      %p32 = scmp.ne.s32.totalorder %s24, %s27
      %p33 = scmp.eq.s32.totalorder %s14, 0
      %p34 = por %p32, %p33
      %p35 = scmp.ne.s32.totalorder %s24, %s27
      %p36 = scmp.eq.s32.totalorder %s19, 1
      %p37 = por %p35, %p36
      %p38 = scmp.ne.s32.totalorder %s27, %s28
      %p39 = scmp.eq.s32.totalorder %s19, 0
      %p40 = por %p38, %p39
      %p41 = scmp.ne.s32.totalorder %s27, %s28
      %p42 = scmp.eq.s32.totalorder %s20, 1
      %p43 = por %p41, %p42
      %p45 = scmp.ne.s32.totalorder %s28, %s44
      %p46 = scmp.eq.s32.totalorder %s20, 0
      %p47 = por %p45, %p46
      %s48 = ssub.s32 %s14, %s21
      %p49 = scmp.eq.s32.totalorder %s48, 0
      %s51 = sadd.s32 %s50, 1
      %s52 = scalar_select %p49, %s50, %s51
      %p55 = pneg %p49
      %p56 = scmp.eq.s32.totalorder %s14, 1
      %p57 = por %p55, %p56
      %p58 = scmp.ne.s32.totalorder %s50, %s53
      %p59 = scmp.eq.s32.totalorder %s14, 0
      %p60 = por %p58, %p59
      %p61 = scmp.ne.s32.totalorder %s50, %s53
      %p62 = scmp.eq.s32.totalorder %s19, 1
      %p63 = por %p61, %p62
      %p64 = scmp.ne.s32.totalorder %s53, %s54
      %p65 = scmp.eq.s32.totalorder %s19, 0
      %p66 = por %p64, %p65
      %p67 = scmp.ne.s32.totalorder %s53, %s54
      %p68 = scmp.eq.s32.totalorder %s20, 1
      %p69 = por %p67, %p68
      %p71 = scmp.ne.s32.totalorder %s54, %s70
      %p72 = scmp.eq.s32.totalorder %s20, 0
      %p73 = por %p71, %p72
      %s75 = sadd.s32 %s74, 1
      %p78 = scmp.eq.s32.totalorder %s14, 1
      %p79 = scmp.ne.s32.totalorder %s74, %s76
      %p80 = scmp.eq.s32.totalorder %s14, 0
      %p81 = por %p79, %p80
      %p82 = scmp.ne.s32.totalorder %s74, %s76
      %p83 = scmp.eq.s32.totalorder %s19, 1
      %p84 = por %p82, %p83
      %p85 = scmp.ne.s32.totalorder %s76, %s77
      %p86 = scmp.eq.s32.totalorder %s19, 0
      %p87 = por %p85, %p86
      %p88 = scmp.ne.s32.totalorder %s76, %s77
      %p89 = scmp.eq.s32.totalorder %s20, 1
      %p90 = por %p88, %p89
      %p92 = scmp.ne.s32.totalorder %s77, %s91
      %p93 = scmp.eq.s32.totalorder %s20, 0
      %p94 = por %p92, %p93
      %s96 = sadd.s32 %s95, 1
      %p99 = scmp.eq.s32.totalorder %s14, 1
      %p100 = scmp.ne.s32.totalorder %s95, %s97
      %p101 = scmp.eq.s32.totalorder %s14, 0
      %p102 = por %p100, %p101
      %p103 = scmp.ne.s32.totalorder %s95, %s97
      %p104 = scmp.eq.s32.totalorder %s19, 1
      %p105 = por %p103, %p104
      %p106 = scmp.ne.s32.totalorder %s97, %s98
      %p107 = scmp.eq.s32.totalorder %s19, 0
      %p108 = por %p106, %p107
      %p109 = scmp.ne.s32.totalorder %s97, %s98
      %p110 = scmp.eq.s32.totalorder %s20, 1
      %p111 = por %p109, %p110
      %p113 = scmp.ne.s32.totalorder %s98, %s112
      %p114 = scmp.eq.s32.totalorder %s20, 0
      %p115 = por %p113, %p114
      %s117 = sadd.s32 %s116, 1
      %p120 = scmp.eq.s32.totalorder %s14, 1
      %p121 = scmp.ne.s32.totalorder %s116, %s118
      %p122 = scmp.eq.s32.totalorder %s14, 0
      %p123 = por %p121, %p122
      %p124 = scmp.ne.s32.totalorder %s116, %s118
      %p125 = scmp.eq.s32.totalorder %s19, 1
      %p126 = por %p124, %p125
      %p127 = scmp.ne.s32.totalorder %s118, %s119
      %p128 = scmp.eq.s32.totalorder %s19, 0
      %p129 = por %p127, %p128
      %p130 = scmp.ne.s32.totalorder %s118, %s119
      %p131 = scmp.eq.s32.totalorder %s20, 1
      %p132 = por %p130, %p131
      %p134 = scmp.ne.s32.totalorder %s119, %s133
      %p135 = scmp.eq.s32.totalorder %s20, 0
      %p136 = por %p134, %p135
      %s137 = ssub.s32 %s14, %s21
      %p138 = scmp.eq.s32.totalorder %s137, 0
      %s140 = sadd.s32 %s139, 1
      %s141 = scalar_select %p138, %s139, %s140
      %p144 = pneg %p138
      %p145 = scmp.eq.s32.totalorder %s14, 1
      %p146 = por %p144, %p145
      %p147 = scmp.ne.s32.totalorder %s139, %s142
      %p148 = scmp.eq.s32.totalorder %s14, 0
      %p149 = por %p147, %p148
      %p150 = scmp.ne.s32.totalorder %s139, %s142
      %p151 = scmp.eq.s32.totalorder %s19, 1
      %p152 = por %p150, %p151
      %p153 = scmp.ne.s32.totalorder %s142, %s143
      %p154 = scmp.eq.s32.totalorder %s19, 0
      %p155 = por %p153, %p154
      %p156 = scmp.ne.s32.totalorder %s142, %s143
      %p157 = scmp.eq.s32.totalorder %s20, 1
      %p158 = por %p156, %p157
      %p160 = scmp.ne.s32.totalorder %s143, %s159
      %p161 = scmp.eq.s32.totalorder %s20, 0
      %p162 = por %p160, %p161
      %s163 = ssub.s32 %s14, %s21
      %p164 = scmp.eq.s32.totalorder %s163, 0
      %s166 = sadd.s32 %s165, 1
      %s167 = scalar_select %p164, %s165, %s166
      %p170 = pneg %p164
      %p171 = scmp.eq.s32.totalorder %s14, 1
      %p172 = por %p170, %p171
      %p173 = scmp.ne.s32.totalorder %s165, %s168
      %p174 = scmp.eq.s32.totalorder %s14, 0
      %p175 = por %p173, %p174
      %p176 = scmp.ne.s32.totalorder %s165, %s168
      %p177 = scmp.eq.s32.totalorder %s19, 1
      %p178 = por %p176, %p177
      %p179 = scmp.ne.s32.totalorder %s168, %s169
      %p180 = scmp.eq.s32.totalorder %s19, 0
      %p181 = por %p179, %p180
      %p182 = scmp.ne.s32.totalorder %s168, %s169
      %p183 = scmp.eq.s32.totalorder %s20, 1
      %p184 = por %p182, %p183
      %p186 = scmp.ne.s32.totalorder %s169, %s185
      %p187 = scmp.eq.s32.totalorder %s20, 0
      %p188 = por %p186, %p187
      %p189 = scmp.le.s32.totalorder 1, %s14
      %p190 = scmp.lt.s32.totalorder %s14, 3
      %p191 = pnand %p189, %p190
      %p192 = pneg %p191
      // Predicated region
      $region9: #{tpu_custom_call.1} parent=5 // pred_check
        _
      $region10: #{tpu_custom_call.1} parent=5 // pred_check_branch
        %194 = sbr.rel (%p191) target = $region12
      $region11: #{tpu_custom_call.1} parent=5 // pred_region
        %s195 = ssub.s32 %s14, 1
        // Predicated region
        $region13: #{tpu_custom_call.1} parent=11 // pred_check
          %p196 = pneg %p87
        $region14: #{tpu_custom_call.1} parent=11 // pred_check_branch
          %198 = sbr.rel (%p196) target = $region16
        $region15: #{tpu_custom_call.1} parent=11 // pred_region
          _
        $region16: #{tpu_custom_call.1} parent=11 // pred_fallthru
          _
        // Predicated region
        $region17: #{tpu_custom_call.1} parent=11 // pred_check
          %p199 = pneg %p108
        $region18: #{tpu_custom_call.1} parent=11 // pred_check_branch
          %201 = sbr.rel (%p199) target = $region20
        $region19: #{tpu_custom_call.1} parent=11 // pred_region
          _
        $region20: #{tpu_custom_call.1} parent=11 // pred_fallthru
          _
        // Predicated region
        $region21: #{tpu_custom_call.1} parent=11 // pred_check
          %p202 = pneg %p129
        $region22: #{tpu_custom_call.1} parent=11 // pred_check_branch
          %204 = sbr.rel (%p202) target = $region24
        $region23: #{tpu_custom_call.1} parent=11 // pred_region
          %s206 = ssub.s32 5376, 5376
          %207 = vsyncadd [#allocation3], %s206
          %s208 = sshll.u32 [#allocation2], 4
          %s209 = int_to_ptr.vmem [resolvable:$true] %s208
          %214 = dma.hbm_to_vmem [thread:$0]  %s4, 5376, %s209, [#allocation3], 256, 256, 16
        $region24: #{tpu_custom_call.1} parent=11 // pred_fallthru
          _
      $region12: #{tpu_custom_call.1} parent=5 // pred_fallthru
        _
      %p215 = scmp.lt.s32.totalorder %s14, 2
      // Predicated region
      $region25: #{tpu_custom_call.1} parent=5 // pred_check
        %p216 = pneg %p215
      $region26: #{tpu_custom_call.1} parent=5 // pred_check_branch
        %218 = sbr.rel (%p216) target = $region28
      $region27: #{tpu_custom_call.1} parent=5 // pred_region
        // Predicated region
        $region29: #{tpu_custom_call.1} parent=27 // pred_check
          %p219 = pneg %p34
        $region30: #{tpu_custom_call.1} parent=27 // pred_check_branch
          %221 = sbr.rel (%p219) target = $region32
        $region31: #{tpu_custom_call.1} parent=27 // pred_region
          %s222 = smul.u32 8, %s14
          %p223 = scmp.lt.s32.totalorder %s222, 15
          %s224 = scalar_select %p223, %s222, 15
          %s225 = smul.addr %s224, 2
          %s226 = smul.addr %s225, 8
          %s227 = scalar_lea.vmem %s0, %s226
          %s228 = smul.u32 8, %s14
        $region32: #{tpu_custom_call.1} parent=27 // pred_fallthru
          _
        // Predicated region
        $region33: #{tpu_custom_call.1} parent=27 // pred_check
          %p229 = pneg %p60
        $region34: #{tpu_custom_call.1} parent=27 // pred_check_branch
          %231 = sbr.rel (%p229) target = $region36
        $region35: #{tpu_custom_call.1} parent=27 // pred_region
          %s232 = smul.u32 8, %s14
          %p233 = scmp.lt.s32.totalorder %s232, 15
          %s234 = scalar_select %p233, %s232, 15
          %s235 = smul.addr %s234, 2
          %s236 = smul.addr %s235, 8
          %s237 = scalar_lea.vmem %s1, %s236
          %s238 = smul.u32 8, %s14
        $region36: #{tpu_custom_call.1} parent=27 // pred_fallthru
          _
      $region28: #{tpu_custom_call.1} parent=5 // pred_fallthru
        _
      %p239 = scmp.le.s32.totalorder 1, %s14
      %p240 = scmp.lt.s32.totalorder %s14, 3
      %p241 = pnand %p239, %p240
      %p242 = pneg %p241
      // Predicated region
      $region37: #{tpu_custom_call.1} parent=5 // pred_check
        _
      $region38: #{tpu_custom_call.1} parent=5 // pred_check_branch
        %244 = sbr.rel (%p241) target = $region40
      $region39: #{tpu_custom_call.1} parent=5 // pred_region
        %s245 = ssub.s32 %s14, 1
        // Predicated region
        $region41: #{tpu_custom_call.1} parent=39 // pred_check
          %p246 = pneg %p129
        $region42: #{tpu_custom_call.1} parent=39 // pred_check_branch
          %248 = sbr.rel (%p246) target = $region44
        $region43: #{tpu_custom_call.1} parent=39 // pred_region
          %249 = dma.done [#allocation3], 5376
        $region44: #{tpu_custom_call.1} parent=39 // pred_fallthru
          _
        %s250 = smul.u32 8, %s19
        %p251 = scmp.lt.s32.totalorder %s250, 15
        %s252 = scalar_select %p251, %s250, 15
        %s253 = smul.addr %s252, 2
        %s254 = smul.addr %s253, 8
        %s255 = scalar_lea.vmem %s0, %s254
        %p256 = pneg %p40
        %p257 = pneg %p37
        %s258 = smul.u32 8, %s19
        %p259 = scmp.lt.s32.totalorder %s258, 15
        %s260 = scalar_select %p259, %s258, 15
        %s261 = smul.addr %s260, 2
        %s262 = smul.addr %s261, 8
        %s263 = scalar_lea.vmem %s1, %s262
        %p264 = pneg %p66
        %p265 = pneg %p63
        %p266 = pneg %p87
        %p267 = pneg %p84
        %p268 = pneg %p108
        %p269 = pneg %p105
        %p270 = pneg %p129
        %p271 = pneg %p126
        %p272 = pneg %p155
        %p273 = pneg %p152
        %s274 = smul.u32 8, %s19
        %p275 = scmp.lt.s32.totalorder %s274, 15
        %s276 = scalar_select %p275, %s274, 15
        %s277 = smul.addr %s276, 2
        %s278 = smul.addr %s277, 8
        %s279 = scalar_lea.vmem %s5, %s278
        %p280 = pneg %p181
        %p281 = pneg %p178
        %s282 = smul.u32 8, %s19
        %p283 = scmp.lt.s32.totalorder %s282, 15
        %s284 = scalar_select %p283, %s282, 15
        %s285 = smul.addr %s284, 2
        %s286 = smul.addr %s285, 8
        %s287 = scalar_lea.vmem %s6, %s286
        %s288 = smul.u32 8, %s19
        %p289 = scmp.lt.s32.totalorder %s288, 15
        %s290 = scalar_select %p289, %s288, 15
        %s291 = smul.addr %s290, 2
        %s292 = smul.addr %s291, 8
        %s293 = scalar_lea.vmem %s0, %s292
        %s294 = smul.u32 8, %s19
        %s295 = smul.u32 8, %s19
        %p296 = scmp.lt.s32.totalorder %s295, 15
        %s297 = scalar_select %p296, %s295, 15
        %s298 = smul.addr %s297, 2
        %s299 = smul.addr %s298, 8
        %s300 = scalar_lea.vmem %s1, %s299
        %s301 = smul.u32 8, %s19
        %s302 = smul.u32 8, %s19
        %p303 = scmp.lt.s32.totalorder %s302, 15
        %s304 = scalar_select %p303, %s302, 15
        %s305 = smul.addr %s304, 2
        %s306 = smul.addr %s305, 8
        %s307 = scalar_lea.vmem %s5, %s306
        %s308 = smul.u32 8, %s19
        %s309 = smul.u32 8, %s19
        %p310 = scmp.lt.s32.totalorder %s309, 15
        %s311 = scalar_select %p310, %s309, 15
        %s312 = smul.addr %s311, 2
        %s313 = smul.addr %s312, 8
        %s314 = scalar_lea.vmem %s6, %s313
        %s315 = smul.u32 8, %s19
        %v316 = vld [vmem:[%s293] sm:$0xff]
        %v317 = vld [vmem:[%s293 + $0x8] sm:$0xff]
        %v318 = vld [vmem:[%s293 + $0x10] sm:$0xff]
        %v319 = vld [vmem:[%s293 + $0x18] sm:$0xff]
        %v320 = vld [vmem:[%s293 + $0x20] sm:$0xff]
        %v321 = vld [vmem:[%s293 + $0x28] sm:$0xff]
        %v322 = vld [vmem:[%s293 + $0x30] sm:$0xff]
        %v323 = vld [vmem:[%s293 + $0x38] sm:$0xff]
        %v324 = vld [vmem:[%s293 + $0x40] sm:$0xff]
        %v325 = vld [vmem:[%s293 + $0x48] sm:$0xff]
        %v326 = vld [vmem:[%s293 + $0x50] sm:$0xff]
        %v327 = vld [vmem:[%s293 + $0x58] sm:$0xff]
        %v328 = vld [vmem:[%s293 + $0x60] sm:$0xff]
        %v329 = vld [vmem:[%s293 + $0x68] sm:$0xff]
        %v330 = vld [vmem:[%s293 + $0x70] sm:$0xff]
        %v331 = vld [vmem:[%s293 + $0x78] sm:$0xff]
        %v332 = vld [vmem:[%s300] sm:$0xff]
        %v333 = vld [vmem:[%s300 + $0x8] sm:$0xff]
        %v334 = vld [vmem:[%s300 + $0x10] sm:$0xff]
        %v335 = vld [vmem:[%s300 + $0x18] sm:$0xff]
        %v336 = vld [vmem:[%s300 + $0x20] sm:$0xff]
        %v337 = vld [vmem:[%s300 + $0x28] sm:$0xff]
        %v338 = vld [vmem:[%s300 + $0x30] sm:$0xff]
        %v339 = vld [vmem:[%s300 + $0x38] sm:$0xff]
        %v340 = vld [vmem:[%s300 + $0x40] sm:$0xff]
        %v341 = vld [vmem:[%s300 + $0x48] sm:$0xff]
        %v342 = vld [vmem:[%s300 + $0x50] sm:$0xff]
        %v343 = vld [vmem:[%s300 + $0x58] sm:$0xff]
        %v344 = vld [vmem:[%s300 + $0x60] sm:$0xff]
        %v345 = vld [vmem:[%s300 + $0x68] sm:$0xff]
        %v346 = vld [vmem:[%s300 + $0x70] sm:$0xff]
        %v347 = vld [vmem:[%s300 + $0x78] sm:$0xff]
        %v348 = vld [vmem:[%s2] sm:$0xff]
        %v349 = vld [vmem:[%s2 + $0x8] sm:$0xff]
        %v350 = vld [vmem:[%s2 + $0x10] sm:$0xff]
        %v351 = vld [vmem:[%s2 + $0x18] sm:$0xff]
        %v352 = vld [vmem:[%s2 + $0x20] sm:$0xff]
        %v353 = vld [vmem:[%s2 + $0x28] sm:$0xff]
        %v354 = vld [vmem:[%s2 + $0x30] sm:$0xff]
        %v355 = vld [vmem:[%s2 + $0x38] sm:$0xff]
        %v356 = vld [vmem:[%s2 + $0x40] sm:$0xff]
        %v357 = vld [vmem:[%s2 + $0x48] sm:$0xff]
        %v358 = vld [vmem:[%s2 + $0x50] sm:$0xff]
        %v359 = vld [vmem:[%s2 + $0x58] sm:$0xff]
        %v360 = vld [vmem:[%s2 + $0x60] sm:$0xff]
        %v361 = vld [vmem:[%s2 + $0x68] sm:$0xff]
        %v362 = vld [vmem:[%s2 + $0x70] sm:$0xff]
        %v363 = vld [vmem:[%s2 + $0x78] sm:$0xff]
        %v364 = vld [vmem:[%s2 + $0x80] sm:$0xff]
        %v365 = vld [vmem:[%s2 + $0x88] sm:$0xff]
        %v366 = vld [vmem:[%s2 + $0x90] sm:$0xff]
        %v367 = vld [vmem:[%s2 + $0x98] sm:$0xff]
        %v368 = vld [vmem:[%s2 + $0xa0] sm:$0xff]
        %v369 = vld [vmem:[%s2 + $0xa8] sm:$0xff]
        %v370 = vld [vmem:[%s2 + $0xb0] sm:$0xff]
        %v371 = vld [vmem:[%s2 + $0xb8] sm:$0xff]
        %v372 = vld [vmem:[%s2 + $0xc0] sm:$0xff]
        %v373 = vld [vmem:[%s2 + $0xc8] sm:$0xff]
        %v374 = vld [vmem:[%s2 + $0xd0] sm:$0xff]
        %v375 = vld [vmem:[%s2 + $0xd8] sm:$0xff]
        %v376 = vld [vmem:[%s2 + $0xe0] sm:$0xff]
        %v377 = vld [vmem:[%s2 + $0xe8] sm:$0xff]
        %v378 = vld [vmem:[%s2 + $0xf0] sm:$0xff]
        %v379 = vld [vmem:[%s2 + $0xf8] sm:$0xff]
        %v380 = vld [vmem:[%s2 + $0x100] sm:$0xff]
        %v381 = vld [vmem:[%s2 + $0x108] sm:$0xff]
        %v382 = vld [vmem:[%s2 + $0x110] sm:$0xff]
        %v383 = vld [vmem:[%s2 + $0x118] sm:$0xff]
        %v384 = vld [vmem:[%s2 + $0x120] sm:$0xff]
        %v385 = vld [vmem:[%s2 + $0x128] sm:$0xff]
        %v386 = vld [vmem:[%s2 + $0x130] sm:$0xff]
        %v387 = vld [vmem:[%s2 + $0x138] sm:$0xff]
        %v388 = vld [vmem:[%s2 + $0x140] sm:$0x1f]
        %v389 = vld [vmem:[%s2 + $0x148] sm:$0x1f]
        %vm390 = vcmask 302080
        %v392 = vsel %vm390, %v317, 0
        %v395 = vsel %vm390, %v319, 0
        %v398 = vsel %vm390, %v321, 0
        %v401 = vsel %vm390, %v323, 0
        %v404 = vsel %vm390, %v325, 0
        %v407 = vsel %vm390, %v327, 0
        %v410 = vsel %vm390, %v329, 0
        %v413 = vsel %vm390, %v331, 0
        %vm415 = vcmask 1044480
        %v417 = vsel %vm415, %v388, 0
        %v420 = vsel %vm415, %v389, 0
        %422 = vmatprep.subr.mxu0 %v349
        %423 = vmatpush1.msra.mxu0 %v348
        %424 = vmatprep.subr.mxu0 %v351
        %425 = vmatpush1.msra.mxu0 %v350
        %426 = vmatprep.subr.mxu0 %v353
        %427 = vmatpush1.msra.mxu0 %v352
        %428 = vmatprep.subr.mxu0 %v355
        %429 = vmatpush1.msra.mxu0 %v354
        %430 = vmatprep.subr.mxu0 %v357
        %431 = vmatpush1.msra.mxu0 %v356
        %432 = vmatprep.subr.mxu0 %v359
        %433 = vmatpush1.msra.mxu0 %v358
        %434 = vmatprep.subr.mxu0 %v361
        %435 = vmatpush1.msra.mxu0 %v360
        %436 = vmatprep.subr.mxu0 %v363
        %437 = vmatpush1.msra.mxu0 %v362
        %438 = vmatprep.subr.mxu0 %v365
        %439 = vmatpush1.msra.mxu0 %v364
        %440 = vmatprep.subr.mxu0 %v367
        %441 = vmatpush1.msra.mxu0 %v366
        %442 = vmatprep.subr.mxu0 %v369
        %443 = vmatpush1.msra.mxu0 %v368
        %444 = vmatprep.subr.mxu0 %v371
        %445 = vmatpush1.msra.mxu0 %v370
        %446 = vmatprep.subr.mxu0 %v373
        %447 = vmatpush1.msra.mxu0 %v372
        %448 = vmatprep.subr.mxu0 %v375
        %449 = vmatpush1.msra.mxu0 %v374
        %450 = vmatprep.subr.mxu0 %v377
        %451 = vmatpush1.msra.mxu0 %v376
        %452 = vmatprep.subr.mxu0 %v379
        %453 = vmatpush1.msra.mxu0 %v378
        %454 = vmatprep.subr.mxu0 %v381
        %455 = vmatpush1.msra.mxu0 %v380
        %456 = vmatprep.subr.mxu0 %v383
        %457 = vmatpush1.msra.mxu0 %v382
        %458 = vmatprep.subr.mxu0 %v385
        %459 = vmatpush1.msra.mxu0 %v384
        %460 = vmatprep.subr.mxu0 %v387
        %461 = vmatpush1.msra.mxu0 %v386
        %462 = vmatprep.subr.mxu0 %v420
        %463 = vmatpush1.msra.mxu0 %v417
        %464 = vmatprep.subr.mxu0 0.0
        %465 = vmatpush1.msra.mxu0 0.0
        %466 = vmatprep.subr.mxu0 0.0
        %467 = vmatpush1.msra.mxu0 0.0
        %468 = vmatprep.subr.mxu0 0.0
        %469 = vmatpush1.msra.mxu0 0.0
        %470 = vmatprep.subr.mxu0 0.0
        %471 = vmatpush1.msra.mxu0 0.0
        %472 = vmatprep.subr.mxu0 0.0
        %473 = vmatpush1.msra.mxu0 0.0
        %474 = vmatprep.subr.mxu0 0.0
        %475 = vmatpush1.msra.mxu0 0.0
        %476 = vmatprep.subr.mxu0 0.0
        %477 = vmatpush1.msra.mxu0 0.0
        %478 = vmatprep.subr.mxu0 0.0
        %479 = vmatpush1.msra.mxu0 0.0
        %480 = vmatprep.subr.mxu0 0.0
        %481 = vmatpush1.msra.mxu0 0.0
        %482 = vmatprep.subr.mxu0 0.0
        %483 = vmatpush1.msra.mxu0 0.0
        %484 = vmatprep.subr.mxu0 0.0
        %485 = vmatpush1.msra.mxu0 0.0
        %486 = vmatprep.mubr.f32.mxu0 %v392
        %487 = vmatmul.mubr.f32.gmra.mrb[0].mxu0 %v316
        %v488 = vpop.f32.mrb[0].mxu0
        %v489 = vadd.f32 0.0, %v488
        %v490 = vpop.f32.mrb[0].mxu0
        %v491 = vadd.f32 0.0, %v490
        %492 = vmatprep.mubr.f32.mxu0 %v395
        %493 = vmatmul.mubr.f32.gmra.mrb[0].mxu0 %v318
        %v494 = vpop.f32.mrb[0].mxu0
        %v495 = vadd.f32 0.0, %v494
        %v496 = vpop.f32.mrb[0].mxu0
        %v497 = vadd.f32 0.0, %v496
        %498 = vmatprep.mubr.f32.mxu0 %v398
        %499 = vmatmul.mubr.f32.gmra.mrb[0].mxu0 %v320
        %v500 = vpop.f32.mrb[0].mxu0
        %v501 = vadd.f32 0.0, %v500
        %v502 = vpop.f32.mrb[0].mxu0
        %v503 = vadd.f32 0.0, %v502
        %504 = vmatprep.mubr.f32.mxu0 %v401
        %505 = vmatmul.mubr.f32.gmra.mrb[0].mxu0 %v322
        %v506 = vpop.f32.mrb[0].mxu0
        %v507 = vadd.f32 0.0, %v506
        %v508 = vpop.f32.mrb[0].mxu0
        %v509 = vadd.f32 0.0, %v508
        %510 = vmatprep.mubr.f32.mxu0 %v404
        %511 = vmatmul.mubr.f32.gmra.mrb[0].mxu0 %v324
        %v512 = vpop.f32.mrb[0].mxu0
        %v513 = vadd.f32 0.0, %v512
        %v514 = vpop.f32.mrb[0].mxu0
        %v515 = vadd.f32 0.0, %v514
        %516 = vmatprep.mubr.f32.mxu0 %v407
        %517 = vmatmul.mubr.f32.gmra.mrb[0].mxu0 %v326
        %v518 = vpop.f32.mrb[0].mxu0
        %v519 = vadd.f32 0.0, %v518
        %v520 = vpop.f32.mrb[0].mxu0
        %v521 = vadd.f32 0.0, %v520
        %522 = vmatprep.mubr.f32.mxu0 %v410
        %523 = vmatmul.mubr.f32.gmra.mrb[0].mxu0 %v328
        %v524 = vpop.f32.mrb[0].mxu0
        %v525 = vadd.f32 0.0, %v524
        %v526 = vpop.f32.mrb[0].mxu0
        %v527 = vadd.f32 0.0, %v526
        %528 = vmatprep.mubr.f32.mxu0 %v413
        %529 = vmatmul.mubr.f32.gmra.mrb[0].mxu0 %v330
        %v530 = vpop.f32.mrb[0].mxu0
        %v531 = vadd.f32 0.0, %v530
        %v532 = vpop.f32.mrb[0].mxu0
        %v533 = vadd.f32 0.0, %v532
        %534 = vdwg.mxu0
        %v535 = vld [vmem:[%s3] sm:$0xff]
        %v536 = vld [vmem:[%s3 + $0x8] sm:$0xff]
        %v537 = vld [vmem:[%s3 + $0x10] sm:$0xff]
        %v538 = vld [vmem:[%s3 + $0x18] sm:$0xff]
        %v539 = vld [vmem:[%s3 + $0x20] sm:$0xff]
        %v540 = vld [vmem:[%s3 + $0x28] sm:$0xff]
        %v541 = vld [vmem:[%s3 + $0x30] sm:$0xff]
        %v542 = vld [vmem:[%s3 + $0x38] sm:$0xff]
        %v543 = vld [vmem:[%s3 + $0x40] sm:$0xff]
        %v544 = vld [vmem:[%s3 + $0x48] sm:$0xff]
        %v545 = vld [vmem:[%s3 + $0x50] sm:$0xff]
        %v546 = vld [vmem:[%s3 + $0x58] sm:$0xff]
        %v547 = vld [vmem:[%s3 + $0x60] sm:$0xff]
        %v548 = vld [vmem:[%s3 + $0x68] sm:$0xff]
        %v549 = vld [vmem:[%s3 + $0x70] sm:$0xff]
        %v550 = vld [vmem:[%s3 + $0x78] sm:$0xff]
        %v551 = vld [vmem:[%s3 + $0x80] sm:$0xff]
        %v552 = vld [vmem:[%s3 + $0x88] sm:$0xff]
        %v553 = vld [vmem:[%s3 + $0x90] sm:$0xff]
        %v554 = vld [vmem:[%s3 + $0x98] sm:$0xff]
        %v555 = vld [vmem:[%s3 + $0xa0] sm:$0xff]
        %v556 = vld [vmem:[%s3 + $0xa8] sm:$0xff]
        %v557 = vld [vmem:[%s3 + $0xb0] sm:$0xff]
        %v558 = vld [vmem:[%s3 + $0xb8] sm:$0xff]
        %v559 = vld [vmem:[%s3 + $0xc0] sm:$0xff]
        %v560 = vld [vmem:[%s3 + $0xc8] sm:$0xff]
        %v561 = vld [vmem:[%s3 + $0xd0] sm:$0xff]
        %v562 = vld [vmem:[%s3 + $0xd8] sm:$0xff]
        %v563 = vld [vmem:[%s3 + $0xe0] sm:$0xff]
        %v564 = vld [vmem:[%s3 + $0xe8] sm:$0xff]
        %v565 = vld [vmem:[%s3 + $0xf0] sm:$0xff]
        %v566 = vld [vmem:[%s3 + $0xf8] sm:$0xff]
        %v567 = vld [vmem:[%s3 + $0x100] sm:$0xff]
        %v568 = vld [vmem:[%s3 + $0x108] sm:$0xff]
        %v569 = vld [vmem:[%s3 + $0x110] sm:$0xff]
        %v570 = vld [vmem:[%s3 + $0x118] sm:$0xff]
        %v571 = vld [vmem:[%s3 + $0x120] sm:$0xff]
        %v572 = vld [vmem:[%s3 + $0x128] sm:$0xff]
        %v573 = vld [vmem:[%s3 + $0x130] sm:$0xff]
        %v574 = vld [vmem:[%s3 + $0x138] sm:$0xff]
        %v575 = vld [vmem:[%s3 + $0x140] sm:$0x1f]
        %v576 = vld [vmem:[%s3 + $0x148] sm:$0x1f]
        %v578 = vsel %vm390, %v333, 0
        %v581 = vsel %vm390, %v335, 0
        %v584 = vsel %vm390, %v337, 0
        %v587 = vsel %vm390, %v339, 0
        %v590 = vsel %vm390, %v341, 0
        %v593 = vsel %vm390, %v343, 0
        %v596 = vsel %vm390, %v345, 0
        %v599 = vsel %vm390, %v347, 0
        %v602 = vsel %vm415, %v575, 0
        %v605 = vsel %vm415, %v576, 0
        %607 = vmatprep.subr.mxu0 %v536
        %608 = vmatpush1.msra.mxu0 %v535
        %609 = vmatprep.subr.mxu0 %v538
        %610 = vmatpush1.msra.mxu0 %v537
        %611 = vmatprep.subr.mxu0 %v540
        %612 = vmatpush1.msra.mxu0 %v539
        %613 = vmatprep.subr.mxu0 %v542
        %614 = vmatpush1.msra.mxu0 %v541
        %615 = vmatprep.subr.mxu0 %v544
        %616 = vmatpush1.msra.mxu0 %v543
        %617 = vmatprep.subr.mxu0 %v546
        %618 = vmatpush1.msra.mxu0 %v545
        %619 = vmatprep.subr.mxu0 %v548
        %620 = vmatpush1.msra.mxu0 %v547
        %621 = vmatprep.subr.mxu0 %v550
        %622 = vmatpush1.msra.mxu0 %v549
        %623 = vmatprep.subr.mxu0 %v552
        %624 = vmatpush1.msra.mxu0 %v551
        %625 = vmatprep.subr.mxu0 %v554
        %626 = vmatpush1.msra.mxu0 %v553
        %627 = vmatprep.subr.mxu0 %v556
        %628 = vmatpush1.msra.mxu0 %v555
        %629 = vmatprep.subr.mxu0 %v558
        %630 = vmatpush1.msra.mxu0 %v557
        %631 = vmatprep.subr.mxu0 %v560
        %632 = vmatpush1.msra.mxu0 %v559
        %633 = vmatprep.subr.mxu0 %v562
        %634 = vmatpush1.msra.mxu0 %v561
        %635 = vmatprep.subr.mxu0 %v564
        %636 = vmatpush1.msra.mxu0 %v563
        %637 = vmatprep.subr.mxu0 %v566
        %638 = vmatpush1.msra.mxu0 %v565
        %639 = vmatprep.subr.mxu0 %v568
        %640 = vmatpush1.msra.mxu0 %v567
        %641 = vmatprep.subr.mxu0 %v570
        %642 = vmatpush1.msra.mxu0 %v569
        %643 = vmatprep.subr.mxu0 %v572
        %644 = vmatpush1.msra.mxu0 %v571
        %645 = vmatprep.subr.mxu0 %v574
        %646 = vmatpush1.msra.mxu0 %v573
        %647 = vmatprep.subr.mxu0 %v605
        %648 = vmatpush1.msra.mxu0 %v602
        %649 = vmatprep.subr.mxu0 0.0
        %650 = vmatpush1.msra.mxu0 0.0
        %651 = vmatprep.subr.mxu0 0.0
        %652 = vmatpush1.msra.mxu0 0.0
        %653 = vmatprep.subr.mxu0 0.0
        %654 = vmatpush1.msra.mxu0 0.0
        %655 = vmatprep.subr.mxu0 0.0
        %656 = vmatpush1.msra.mxu0 0.0
        %657 = vmatprep.subr.mxu0 0.0
        %658 = vmatpush1.msra.mxu0 0.0
        %659 = vmatprep.subr.mxu0 0.0
        %660 = vmatpush1.msra.mxu0 0.0
        %661 = vmatprep.subr.mxu0 0.0
        %662 = vmatpush1.msra.mxu0 0.0
        %663 = vmatprep.subr.mxu0 0.0
        %664 = vmatpush1.msra.mxu0 0.0
        %665 = vmatprep.subr.mxu0 0.0
        %666 = vmatpush1.msra.mxu0 0.0
        %667 = vmatprep.subr.mxu0 0.0
        %668 = vmatpush1.msra.mxu0 0.0
        %669 = vmatprep.subr.mxu0 0.0
        %670 = vmatpush1.msra.mxu0 0.0
        %671 = vmatprep.mubr.f32.mxu0 %v578
        %672 = vmatmul.mubr.f32.gmra.mrb[0].mxu0 %v332
        %v673 = vpop.f32.mrb[0].mxu0
        %v674 = vadd.f32 0.0, %v673
        %v675 = vpop.f32.mrb[0].mxu0
        %v676 = vadd.f32 0.0, %v675
        %677 = vmatprep.mubr.f32.mxu0 %v581
        %678 = vmatmul.mubr.f32.gmra.mrb[0].mxu0 %v334
        %v679 = vpop.f32.mrb[0].mxu0
        %v680 = vadd.f32 0.0, %v679
        %v681 = vpop.f32.mrb[0].mxu0
        %v682 = vadd.f32 0.0, %v681
        %683 = vmatprep.mubr.f32.mxu0 %v584
        %684 = vmatmul.mubr.f32.gmra.mrb[0].mxu0 %v336
        %v685 = vpop.f32.mrb[0].mxu0
        %v686 = vadd.f32 0.0, %v685
        %v687 = vpop.f32.mrb[0].mxu0
        %v688 = vadd.f32 0.0, %v687
        %689 = vmatprep.mubr.f32.mxu0 %v587
        %690 = vmatmul.mubr.f32.gmra.mrb[0].mxu0 %v338
        %v691 = vpop.f32.mrb[0].mxu0
        %v692 = vadd.f32 0.0, %v691
        %v693 = vpop.f32.mrb[0].mxu0
        %v694 = vadd.f32 0.0, %v693
        %695 = vmatprep.mubr.f32.mxu0 %v590
        %696 = vmatmul.mubr.f32.gmra.mrb[0].mxu0 %v340
        %v697 = vpop.f32.mrb[0].mxu0
        %v698 = vadd.f32 0.0, %v697
        %v699 = vpop.f32.mrb[0].mxu0
        %v700 = vadd.f32 0.0, %v699
        %701 = vmatprep.mubr.f32.mxu0 %v593
        %702 = vmatmul.mubr.f32.gmra.mrb[0].mxu0 %v342
        %v703 = vpop.f32.mrb[0].mxu0
        %v704 = vadd.f32 0.0, %v703
        %v705 = vpop.f32.mrb[0].mxu0
        %v706 = vadd.f32 0.0, %v705
        %707 = vmatprep.mubr.f32.mxu0 %v596
        %708 = vmatmul.mubr.f32.gmra.mrb[0].mxu0 %v344
        %v709 = vpop.f32.mrb[0].mxu0
        %v710 = vadd.f32 0.0, %v709
        %v711 = vpop.f32.mrb[0].mxu0
        %v712 = vadd.f32 0.0, %v711
        %713 = vmatprep.mubr.f32.mxu0 %v599
        %714 = vmatmul.mubr.f32.gmra.mrb[0].mxu0 %v346
        %v715 = vpop.f32.mrb[0].mxu0
        %v716 = vadd.f32 0.0, %v715
        %v717 = vpop.f32.mrb[0].mxu0
        %v718 = vadd.f32 0.0, %v717
        %719 = vdwg.mxu0
        %v720 = vadd.f32 %v316, %v332
        %v721 = vadd.f32 %v317, %v333
        %v722 = vadd.f32 %v318, %v334
        %v723 = vadd.f32 %v319, %v335
        %v724 = vadd.f32 %v320, %v336
        %v725 = vadd.f32 %v321, %v337
        %v726 = vadd.f32 %v322, %v338
        %v727 = vadd.f32 %v323, %v339
        %v728 = vadd.f32 %v324, %v340
        %v729 = vadd.f32 %v325, %v341
        %v730 = vadd.f32 %v326, %v342
        %v731 = vadd.f32 %v327, %v343
        %v732 = vadd.f32 %v328, %v344
        %v733 = vadd.f32 %v329, %v345
        %v734 = vadd.f32 %v330, %v346
        %v735 = vadd.f32 %v331, %v347
        %v736 = vld [vmem:[#allocation2] sm:$0xff]
        %v737 = vld [vmem:[#allocation2 + $0x8] sm:$0xff]
        %v738 = vld [vmem:[#allocation2 + $0x10] sm:$0xff]
        %v739 = vld [vmem:[#allocation2 + $0x18] sm:$0xff]
        %v740 = vld [vmem:[#allocation2 + $0x20] sm:$0xff]
        %v741 = vld [vmem:[#allocation2 + $0x28] sm:$0xff]
        %v742 = vld [vmem:[#allocation2 + $0x30] sm:$0xff]
        %v743 = vld [vmem:[#allocation2 + $0x38] sm:$0xff]
        %v744 = vld [vmem:[#allocation2 + $0x40] sm:$0xff]
        %v745 = vld [vmem:[#allocation2 + $0x48] sm:$0xff]
        %v746 = vld [vmem:[#allocation2 + $0x50] sm:$0xff]
        %v747 = vld [vmem:[#allocation2 + $0x58] sm:$0xff]
        %v748 = vld [vmem:[#allocation2 + $0x60] sm:$0xff]
        %v749 = vld [vmem:[#allocation2 + $0x68] sm:$0xff]
        %v750 = vld [vmem:[#allocation2 + $0x70] sm:$0xff]
        %v751 = vld [vmem:[#allocation2 + $0x78] sm:$0xff]
        %v752 = vld [vmem:[#allocation2 + $0x80] sm:$0xff]
        %v753 = vld [vmem:[#allocation2 + $0x88] sm:$0xff]
        %v754 = vld [vmem:[#allocation2 + $0x90] sm:$0xff]
        %v755 = vld [vmem:[#allocation2 + $0x98] sm:$0xff]
        %v756 = vld [vmem:[#allocation2 + $0xa0] sm:$0xff]
        %v757 = vld [vmem:[#allocation2 + $0xa8] sm:$0xff]
        %v758 = vld [vmem:[#allocation2 + $0xb0] sm:$0xff]
        %v759 = vld [vmem:[#allocation2 + $0xb8] sm:$0xff]
        %v760 = vld [vmem:[#allocation2 + $0xc0] sm:$0xff]
        %v761 = vld [vmem:[#allocation2 + $0xc8] sm:$0xff]
        %v762 = vld [vmem:[#allocation2 + $0xd0] sm:$0xff]
        %v763 = vld [vmem:[#allocation2 + $0xd8] sm:$0xff]
        %v764 = vld [vmem:[#allocation2 + $0xe0] sm:$0xff]
        %v765 = vld [vmem:[#allocation2 + $0xe8] sm:$0xff]
        %v766 = vld [vmem:[#allocation2 + $0xf0] sm:$0xff]
        %v767 = vld [vmem:[#allocation2 + $0xf8] sm:$0xff]
        %v768 = vld [vmem:[#allocation2 + $0x100] sm:$0xff]
        %v769 = vld [vmem:[#allocation2 + $0x108] sm:$0xff]
        %v770 = vld [vmem:[#allocation2 + $0x110] sm:$0xff]
        %v771 = vld [vmem:[#allocation2 + $0x118] sm:$0xff]
        %v772 = vld [vmem:[#allocation2 + $0x120] sm:$0xff]
        %v773 = vld [vmem:[#allocation2 + $0x128] sm:$0xff]
        %v774 = vld [vmem:[#allocation2 + $0x130] sm:$0xff]
        %v775 = vld [vmem:[#allocation2 + $0x138] sm:$0xff]
        %v776 = vld [vmem:[#allocation2 + $0x140] sm:$0x1f]
        %v777 = vld [vmem:[#allocation2 + $0x148] sm:$0x1f]
        %v779 = vsel %vm390, %v721, 0
        %v782 = vsel %vm390, %v723, 0
        %v785 = vsel %vm390, %v725, 0
        %v788 = vsel %vm390, %v727, 0
        %v791 = vsel %vm390, %v729, 0
        %v794 = vsel %vm390, %v731, 0
        %v797 = vsel %vm390, %v733, 0
        %v800 = vsel %vm390, %v735, 0
        %v803 = vsel %vm415, %v776, 0
        %v806 = vsel %vm415, %v777, 0
        %808 = vmatprep.subr.mxu0 %v737
        %809 = vmatpush1.msra.mxu0 %v736
        %810 = vmatprep.subr.mxu0 %v739
        %811 = vmatpush1.msra.mxu0 %v738
        %812 = vmatprep.subr.mxu0 %v741
        %813 = vmatpush1.msra.mxu0 %v740
        %814 = vmatprep.subr.mxu0 %v743
        %815 = vmatpush1.msra.mxu0 %v742
        %816 = vmatprep.subr.mxu0 %v745
        %817 = vmatpush1.msra.mxu0 %v744
        %818 = vmatprep.subr.mxu0 %v747
        %819 = vmatpush1.msra.mxu0 %v746
        %820 = vmatprep.subr.mxu0 %v749
        %821 = vmatpush1.msra.mxu0 %v748
        %822 = vmatprep.subr.mxu0 %v751
        %823 = vmatpush1.msra.mxu0 %v750
        %824 = vmatprep.subr.mxu0 %v753
        %825 = vmatpush1.msra.mxu0 %v752
        %826 = vmatprep.subr.mxu0 %v755
        %827 = vmatpush1.msra.mxu0 %v754
        %828 = vmatprep.subr.mxu0 %v757
        %829 = vmatpush1.msra.mxu0 %v756
        %830 = vmatprep.subr.mxu0 %v759
        %831 = vmatpush1.msra.mxu0 %v758
        %832 = vmatprep.subr.mxu0 %v761
        %833 = vmatpush1.msra.mxu0 %v760
        %834 = vmatprep.subr.mxu0 %v763
        %835 = vmatpush1.msra.mxu0 %v762
        %836 = vmatprep.subr.mxu0 %v765
        %837 = vmatpush1.msra.mxu0 %v764
        %838 = vmatprep.subr.mxu0 %v767
        %839 = vmatpush1.msra.mxu0 %v766
        %840 = vmatprep.subr.mxu0 %v769
        %841 = vmatpush1.msra.mxu0 %v768
        %842 = vmatprep.subr.mxu0 %v771
        %843 = vmatpush1.msra.mxu0 %v770
        %844 = vmatprep.subr.mxu0 %v773
        %845 = vmatpush1.msra.mxu0 %v772
        %846 = vmatprep.subr.mxu0 %v775
        %847 = vmatpush1.msra.mxu0 %v774
        %848 = vmatprep.subr.mxu0 %v806
        %849 = vmatpush1.msra.mxu0 %v803
        %850 = vmatprep.subr.mxu0 0.0
        %851 = vmatpush1.msra.mxu0 0.0
        %852 = vmatprep.subr.mxu0 0.0
        %853 = vmatpush1.msra.mxu0 0.0
        %854 = vmatprep.subr.mxu0 0.0
        %855 = vmatpush1.msra.mxu0 0.0
        %856 = vmatprep.subr.mxu0 0.0
        %857 = vmatpush1.msra.mxu0 0.0
        %858 = vmatprep.subr.mxu0 0.0
        %859 = vmatpush1.msra.mxu0 0.0
        %860 = vmatprep.subr.mxu0 0.0
        %861 = vmatpush1.msra.mxu0 0.0
        %862 = vmatprep.subr.mxu0 0.0
        %863 = vmatpush1.msra.mxu0 0.0
        %864 = vmatprep.subr.mxu0 0.0
        %865 = vmatpush1.msra.mxu0 0.0
        %866 = vmatprep.subr.mxu0 0.0
        %867 = vmatpush1.msra.mxu0 0.0
        %868 = vmatprep.subr.mxu0 0.0
        %869 = vmatpush1.msra.mxu0 0.0
        %870 = vmatprep.subr.mxu0 0.0
        %871 = vmatpush1.msra.mxu0 0.0
        %872 = vmatprep.mubr.f32.mxu0 %v779
        %873 = vmatmul.mubr.f32.gmra.mrb[0].mxu0 %v720
        %v874 = vpop.f32.mrb[0].mxu0
        %v875 = vadd.f32 0.0, %v874
        %v876 = vpop.f32.mrb[0].mxu0
        %v877 = vadd.f32 0.0, %v876
        %878 = vmatprep.mubr.f32.mxu0 %v782
        %879 = vmatmul.mubr.f32.gmra.mrb[0].mxu0 %v722
        %v880 = vpop.f32.mrb[0].mxu0
        %v881 = vadd.f32 0.0, %v880
        %v882 = vpop.f32.mrb[0].mxu0
        %v883 = vadd.f32 0.0, %v882
        %884 = vmatprep.mubr.f32.mxu0 %v785
        %885 = vmatmul.mubr.f32.gmra.mrb[0].mxu0 %v724
        %v886 = vpop.f32.mrb[0].mxu0
        %v887 = vadd.f32 0.0, %v886
        %v888 = vpop.f32.mrb[0].mxu0
        %v889 = vadd.f32 0.0, %v888
        %890 = vmatprep.mubr.f32.mxu0 %v788
        %891 = vmatmul.mubr.f32.gmra.mrb[0].mxu0 %v726
        %v892 = vpop.f32.mrb[0].mxu0
        %v893 = vadd.f32 0.0, %v892
        %v894 = vpop.f32.mrb[0].mxu0
        %v895 = vadd.f32 0.0, %v894
        %896 = vmatprep.mubr.f32.mxu0 %v791
        %897 = vmatmul.mubr.f32.gmra.mrb[0].mxu0 %v728
        %v898 = vpop.f32.mrb[0].mxu0
        %v899 = vadd.f32 0.0, %v898
        %v900 = vpop.f32.mrb[0].mxu0
        %v901 = vadd.f32 0.0, %v900
        %902 = vmatprep.mubr.f32.mxu0 %v794
        %903 = vmatmul.mubr.f32.gmra.mrb[0].mxu0 %v730
        %v904 = vpop.f32.mrb[0].mxu0
        %v905 = vadd.f32 0.0, %v904
        %v906 = vpop.f32.mrb[0].mxu0
        %v907 = vadd.f32 0.0, %v906
        %908 = vmatprep.mubr.f32.mxu0 %v797
        %909 = vmatmul.mubr.f32.gmra.mrb[0].mxu0 %v732
        %v910 = vpop.f32.mrb[0].mxu0
        %v911 = vadd.f32 0.0, %v910
        %v912 = vpop.f32.mrb[0].mxu0
        %v913 = vadd.f32 0.0, %v912
        %914 = vmatprep.mubr.f32.mxu0 %v800
        %915 = vmatmul.mubr.f32.gmra.mrb[0].mxu0 %v734
        %v916 = vpop.f32.mrb[0].mxu0
        %v917 = vadd.f32 0.0, %v916
        %v918 = vpop.f32.mrb[0].mxu0
        %v919 = vadd.f32 0.0, %v918
        %920 = vdwg.mxu0
        %v921 = vsub.f32 %v489, %v674
        %v922 = vsub.f32 %v491, %v676
        %v923 = vsub.f32 %v495, %v680
        %v924 = vsub.f32 %v497, %v682
        %v925 = vsub.f32 %v501, %v686
        %v926 = vsub.f32 %v503, %v688
        %v927 = vsub.f32 %v507, %v692
        %v928 = vsub.f32 %v509, %v694
        %v929 = vsub.f32 %v513, %v698
        %v930 = vsub.f32 %v515, %v700
        %v931 = vsub.f32 %v519, %v704
        %v932 = vsub.f32 %v521, %v706
        %v933 = vsub.f32 %v525, %v710
        %v934 = vsub.f32 %v527, %v712
        %v935 = vsub.f32 %v531, %v716
        %v936 = vsub.f32 %v533, %v718
        %937 = vst [vmem:[%s307] sm:$0xff] %v921
        %938 = vst.msk [vmem:[%s307 + $0x8] sm:$0xff] %vm390, %v922
        %939 = vst [vmem:[%s307 + $0x10] sm:$0xff] %v923
        %940 = vst.msk [vmem:[%s307 + $0x18] sm:$0xff] %vm390, %v924
        %941 = vst [vmem:[%s307 + $0x20] sm:$0xff] %v925
        %942 = vst.msk [vmem:[%s307 + $0x28] sm:$0xff] %vm390, %v926
        %943 = vst [vmem:[%s307 + $0x30] sm:$0xff] %v927
        %944 = vst.msk [vmem:[%s307 + $0x38] sm:$0xff] %vm390, %v928
        %945 = vst [vmem:[%s307 + $0x40] sm:$0xff] %v929
        %946 = vst.msk [vmem:[%s307 + $0x48] sm:$0xff] %vm390, %v930
        %947 = vst [vmem:[%s307 + $0x50] sm:$0xff] %v931
        %948 = vst.msk [vmem:[%s307 + $0x58] sm:$0xff] %vm390, %v932
        %949 = vst [vmem:[%s307 + $0x60] sm:$0xff] %v933
        %950 = vst.msk [vmem:[%s307 + $0x68] sm:$0xff] %vm390, %v934
        %951 = vst [vmem:[%s307 + $0x70] sm:$0xff] %v935
        %952 = vst.msk [vmem:[%s307 + $0x78] sm:$0xff] %vm390, %v936
        %v953 = vsub.f32 %v875, %v489
        %v954 = vsub.f32 %v877, %v491
        %v955 = vsub.f32 %v881, %v495
        %v956 = vsub.f32 %v883, %v497
        %v957 = vsub.f32 %v887, %v501
        %v958 = vsub.f32 %v889, %v503
        %v959 = vsub.f32 %v893, %v507
        %v960 = vsub.f32 %v895, %v509
        %v961 = vsub.f32 %v899, %v513
        %v962 = vsub.f32 %v901, %v515
        %v963 = vsub.f32 %v905, %v519
        %v964 = vsub.f32 %v907, %v521
        %v965 = vsub.f32 %v911, %v525
        %v966 = vsub.f32 %v913, %v527
        %v967 = vsub.f32 %v917, %v531
        %v968 = vsub.f32 %v919, %v533
        %v969 = vsub.f32 %v953, %v674
        %v970 = vsub.f32 %v954, %v676
        %v971 = vsub.f32 %v955, %v680
        %v972 = vsub.f32 %v956, %v682
        %v973 = vsub.f32 %v957, %v686
        %v974 = vsub.f32 %v958, %v688
        %v975 = vsub.f32 %v959, %v692
        %v976 = vsub.f32 %v960, %v694
        %v977 = vsub.f32 %v961, %v698
        %v978 = vsub.f32 %v962, %v700
        %v979 = vsub.f32 %v963, %v704
        %v980 = vsub.f32 %v964, %v706
        %v981 = vsub.f32 %v965, %v710
        %v982 = vsub.f32 %v966, %v712
        %v983 = vsub.f32 %v967, %v716
        %v984 = vsub.f32 %v968, %v718
        %985 = vst [vmem:[%s314] sm:$0xff] %v969
        %986 = vst.msk [vmem:[%s314 + $0x8] sm:$0xff] %vm390, %v970
        %987 = vst [vmem:[%s314 + $0x10] sm:$0xff] %v971
        %988 = vst.msk [vmem:[%s314 + $0x18] sm:$0xff] %vm390, %v972
        %989 = vst [vmem:[%s314 + $0x20] sm:$0xff] %v973
        %990 = vst.msk [vmem:[%s314 + $0x28] sm:$0xff] %vm390, %v974
        %991 = vst [vmem:[%s314 + $0x30] sm:$0xff] %v975
        %992 = vst.msk [vmem:[%s314 + $0x38] sm:$0xff] %vm390, %v976
        %993 = vst [vmem:[%s314 + $0x40] sm:$0xff] %v977
        %994 = vst.msk [vmem:[%s314 + $0x48] sm:$0xff] %vm390, %v978
        %995 = vst [vmem:[%s314 + $0x50] sm:$0xff] %v979
        %996 = vst.msk [vmem:[%s314 + $0x58] sm:$0xff] %vm390, %v980
        %997 = vst [vmem:[%s314 + $0x60] sm:$0xff] %v981
        %998 = vst.msk [vmem:[%s314 + $0x68] sm:$0xff] %vm390, %v982
        %999 = vst [vmem:[%s314 + $0x70] sm:$0xff] %v983
        %1000 = vst.msk [vmem:[%s314 + $0x78] sm:$0xff] %vm390, %v984
        %s1001 = smul.u32 8, %s19
        %p1002 = scmp.lt.s32.totalorder %s1001, 15
        %s1003 = scalar_select %p1002, %s1001, 15
        %s1004 = smul.addr %s1003, 2
        %s1005 = smul.addr %s1004, 8
        %s1006 = scalar_lea.vmem %s5, %s1005
        %s1007 = smul.u32 8, %s19
        %p1008 = scmp.lt.s32.totalorder %s1007, 15
        %s1009 = scalar_select %p1008, %s1007, 15
        %s1010 = smul.addr %s1009, 2
        %s1011 = smul.addr %s1010, 8
        %s1012 = scalar_lea.vmem %s6, %s1011
        // Predicated region
        $region45: #{tpu_custom_call.1} parent=39 // pred_check
          %p1013 = pneg %p152
        $region46: #{tpu_custom_call.1} parent=39 // pred_check_branch
          %1015 = sbr.rel (%p1013) target = $region48
        $region47: #{tpu_custom_call.1} parent=39 // pred_region
          %s1016 = smul.u32 8, %s19
        $region48: #{tpu_custom_call.1} parent=39 // pred_fallthru
          _
        // Predicated region
        $region49: #{tpu_custom_call.1} parent=39 // pred_check
          %p1017 = pneg %p178
        $region50: #{tpu_custom_call.1} parent=39 // pred_check_branch
          %1019 = sbr.rel (%p1017) target = $region52
        $region51: #{tpu_custom_call.1} parent=39 // pred_region
          %s1020 = smul.u32 8, %s19
        $region52: #{tpu_custom_call.1} parent=39 // pred_fallthru
          _
      $region40: #{tpu_custom_call.1} parent=5 // pred_fallthru
        _
      %p1021 = scmp.le.s32.totalorder 2, %s14
      // Predicated region
      $region53: #{tpu_custom_call.1} parent=5 // pred_check
        %p1022 = pneg %p1021
      $region54: #{tpu_custom_call.1} parent=5 // pred_check_branch
        %1024 = sbr.rel (%p1022) target = $region56
      $region55: #{tpu_custom_call.1} parent=5 // pred_region
        %s1025 = ssub.s32 %s14, 2
        // Predicated region
        $region57: #{tpu_custom_call.1} parent=55 // pred_check
          %p1026 = pneg %p158
        $region58: #{tpu_custom_call.1} parent=55 // pred_check_branch
          %1028 = sbr.rel (%p1026) target = $region60
        $region59: #{tpu_custom_call.1} parent=55 // pred_region
          %s1029 = smul.u32 8, %s20
          %p1030 = scmp.lt.s32.totalorder %s1029, 15
          %s1031 = scalar_select %p1030, %s1029, 15
          %s1032 = smul.addr %s1031, 2
          %s1033 = smul.addr %s1032, 8
          %s1034 = scalar_lea.vmem %s5, %s1033
        $region60: #{tpu_custom_call.1} parent=55 // pred_fallthru
          _
        // Predicated region
        $region61: #{tpu_custom_call.1} parent=55 // pred_check
          %p1035 = pneg %p184
        $region62: #{tpu_custom_call.1} parent=55 // pred_check_branch
          %1037 = sbr.rel (%p1035) target = $region64
        $region63: #{tpu_custom_call.1} parent=55 // pred_region
          %s1038 = smul.u32 8, %s20
          %p1039 = scmp.lt.s32.totalorder %s1038, 15
          %s1040 = scalar_select %p1039, %s1038, 15
          %s1041 = smul.addr %s1040, 2
          %s1042 = smul.addr %s1041, 8
          %s1043 = scalar_lea.vmem %s6, %s1042
        $region64: #{tpu_custom_call.1} parent=55 // pred_fallthru
          _
      $region56: #{tpu_custom_call.1} parent=5 // pred_fallthru
        _
    $region6: #{tpu_custom_call.1} parent=1 // loop_footer
      %s18 = sadd.s32 1, %s14
    $region7: #{tpu_custom_call.1} parent=1 // loop_footer_branch
      %13 = sbr.rel target = $region3
    $region8: #{tpu_custom_call.1} parent=1 // loop_exit
      _
    %1044 = vsyncpa [#allocation3], 1
    %s1045 = scalar_lea.sflag [#allocation3], 1
    %1046 = vsyncpa %s1045, 1

</llo_original>
